<compile_context>
chip_gen: v6e
topology: v6e:2x2x1
jax: 0.10.0
libtpu: 0.0.40
codegen_flags: <defaults>
</compile_context>

<pallas_src>
import jax
import jax.numpy as jnp
from jax.experimental import pallas as pl
from jax.experimental.pallas import tpu as pltpu

BN_EPS = 1e-5


def _make_bnn_kernel(batch_size, inv_keep, matmul_dtype):
    inv_b = 1.0 / float(batch_size)
    inv_keep = float(inv_keep)

    def kernel(x_ref, g1_ref, be1_ref,                    # (B,IN), (1,IN), (1,IN)
               w1_mu_ref, w1_lv_ref, w1_eps_ref, b1_ref,  # (IN,H) x3, (1,H)
               g2_ref, be2_ref,                           # (1,H), (1,H)
               w2_mu_ref, w2_lv_ref, w2_eps_ref, b2_ref,  # (H,OUT) x3, (1,OUT)
               mask_ref,                                  # (B,H) {0,1} f32
               out_ref, w1_out_ref, w2_out_ref):          # (B,OUT), (IN,H), (H,OUT)
        x = x_ref[...]

        # ---- BatchNorm1d(input): single-pass batch stats, fused scale/shift ----
        mean1 = jnp.sum(x, axis=0, keepdims=True) * inv_b
        var1 = jnp.sum(x * x, axis=0, keepdims=True) * inv_b - mean1 * mean1
        s1 = g1_ref[...] * jax.lax.rsqrt(var1 + BN_EPS)
        x_bn = x * s1 + (be1_ref[...] - mean1 * s1)

        # ---- Fused Bayesian reparameterization: W1 = mu + exp(0.5*lv)*eps ----
        w1 = w1_mu_ref[...] + jnp.exp(0.5 * w1_lv_ref[...]) * w1_eps_ref[...]
        w1_out_ref[...] = w1

        # ---- hidden = tanh(x_bn @ W1 + b1) ----
        h = jnp.tanh(
            jnp.dot(x_bn.astype(matmul_dtype), w1.astype(matmul_dtype),
                    preferred_element_type=jnp.float32)
            + b1_ref[...]
        )

        # ---- BatchNorm1d(hidden) with the dropout keep-scale folded in ----
        mean2 = jnp.sum(h, axis=0, keepdims=True) * inv_b
        var2 = jnp.sum(h * h, axis=0, keepdims=True) * inv_b - mean2 * mean2
        s2 = g2_ref[...] * jax.lax.rsqrt(var2 + BN_EPS)
        scale2 = s2 * inv_keep
        shift2 = (be2_ref[...] - mean2 * s2) * inv_keep
        # Dropout is now a single multiply by the {0,1} keep mask.
        h_d = (h * scale2 + shift2) * mask_ref[...]

        # ---- Fused Bayesian reparameterization: W2 = mu + exp(0.5*lv)*eps ----
        # (No OUT-axis lane padding: output is tiny; masked stores are cheaper
        #  than wrapper pads/slices and a 16x wider reparam.)
        w2 = w2_mu_ref[...] + jnp.exp(0.5 * w2_lv_ref[...]) * w2_eps_ref[...]
        w2_out_ref[...] = w2

        # ---- output = h_drop @ W2 + b2 ----
        out_ref[...] = (
            jnp.dot(h_d.astype(matmul_dtype), w2.astype(matmul_dtype),
                    preferred_element_type=jnp.float32)
            + b2_ref[...]
        )

    return kernel


def bnn_forward_pallas(x, bn1_gamma, bn1_beta,
                       w1_mu, w1_log_var, w1_eps, b1,
                       bn2_gamma, bn2_beta,
                       w2_mu, w2_log_var, w2_eps, b2,
                       keep_mask, dropout_rate, use_bf16_matmul=False):
    """x: (B, IN); bn params / biases as (1, F) rows; keep_mask: (B, H) of {0,1}.

    Returns (output (B, OUT), sampled W1 (IN, H), sampled W2 (H, OUT))."""
    B, in_size = x.shape
    hidden = w1_mu.shape[1]
    out_size = w2_mu.shape[1]

    apply_dropout = float(dropout_rate) > 0.0
    inv_keep = 1.0 / (1.0 - float(dropout_rate)) if apply_dropout else 1.0
    matmul_dtype = jnp.bfloat16 if use_bf16_matmul else jnp.float32

    kernel = _make_bnn_kernel(B, inv_keep, matmul_dtype)

    vmem = pl.BlockSpec(memory_space=pltpu.MemorySpace.VMEM)

    inputs = (x, bn1_gamma, bn1_beta,
              w1_mu, w1_log_var, w1_eps, b1,
              bn2_gamma, bn2_beta,
              w2_mu, w2_log_var, w2_eps, b2,
              keep_mask)

    # VMEM budget: all operands + outputs (single block, no double-buffering),
    # with generous headroom; clamp to the default scoped limit.
    io_bytes = sum(int(a.size) * a.dtype.itemsize for a in inputs)
    io_bytes += 4 * (B * out_size + in_size * hidden + hidden * out_size)
    vmem_limit = int(min(32 * 1024 * 1024, max(8 * 1024 * 1024, 4 * io_bytes)))

    out, w1_sampled, w2_sampled = pl.pallas_call(
        kernel,
        out_shape=(
            jax.ShapeDtypeStruct((B, out_size), jnp.float32),
            jax.ShapeDtypeStruct((in_size, hidden), jnp.float32),
            jax.ShapeDtypeStruct((hidden, out_size), jnp.float32),
        ),
        in_specs=[vmem] * len(inputs),
        out_specs=(vmem, vmem, vmem),
        compiler_params=pltpu.CompilerParams(vmem_limit_bytes=vmem_limit),
    )(*inputs)

    return out, w1_sampled, w2_sampled


class BayesianNeuralNetworkWithBNPallas:
    """JAX/Pallas port of the PyTorch BayesianNeuralNetworkWithBN (training mode)."""

    def __init__(self, input_size, hidden_size, output_size, dropout_rate, key):
        self.input_size = input_size
        self.hidden_size = hidden_size
        self.output_size = output_size
        self.dropout_rate = float(dropout_rate)

        ks = jax.random.split(key, 8)
        # torch.randn-style deterministic init
        self.weights_in_hidden_mu = jax.random.normal(ks[0], (input_size, hidden_size), jnp.float32)
        self.weights_in_hidden_log_var = jax.random.normal(ks[1], (input_size, hidden_size), jnp.float32)
        self.weights_hidden_out_mu = jax.random.normal(ks[2], (hidden_size, output_size), jnp.float32)
        self.weights_hidden_out_log_var = jax.random.normal(ks[3], (hidden_size, output_size), jnp.float32)
        self.bias_hidden_mu = jax.random.normal(ks[4], (hidden_size,), jnp.float32)
        self.bias_hidden_log_var = jax.random.normal(ks[5], (hidden_size,), jnp.float32)
        self.bias_out_mu = jax.random.normal(ks[6], (output_size,), jnp.float32)
        self.bias_out_log_var = jax.random.normal(ks[7], (output_size,), jnp.float32)

        # BatchNorm affine params (PyTorch default init: weight=1, bias=0)
        self.bn_input_gamma = jnp.ones((input_size,), jnp.float32)
        self.bn_input_beta = jnp.zeros((input_size,), jnp.float32)
        self.bn_hidden_gamma = jnp.ones((hidden_size,), jnp.float32)
        self.bn_hidden_beta = jnp.zeros((hidden_size,), jnp.float32)

    def forward(self, x, rng_key):
        B = x.shape[0]
        k_w1, k_w2, k_b1, k_b2, k_drop = jax.random.split(rng_key, 5)

        # Gaussian noise for the weight reparameterization; the reparam math
        # itself (mu + exp(0.5*lv)*eps) is fused into the Pallas kernel.
        # TODO(synk): generate eps in-kernel (pltpu.stateful_normal) on
        # TPU-only deployments to remove these HBM inputs + XLA RNG ops.
        w1_eps = jax.random.normal(k_w1, self.weights_in_hidden_mu.shape, jnp.float32)
        w2_eps = jax.random.normal(k_w2, self.weights_hidden_out_mu.shape, jnp.float32)

        # Bias reparameterization (tiny vectors; plain JAX glue).
        bias_hidden = (
            self.bias_hidden_mu
            + jnp.exp(0.5 * self.bias_hidden_log_var)
            * jax.random.normal(k_b1, self.bias_hidden_log_var.shape, jnp.float32)
        )
        bias_out = (
            self.bias_out_mu
            + jnp.exp(0.5 * self.bias_out_log_var)
            * jax.random.normal(k_b2, self.bias_out_log_var.shape, jnp.float32)
        )

        # Dropout keep-mask {0,1}; the 1/(1-p) scale is folded into the BN2
        # scale/shift inside the kernel.
        if self.dropout_rate > 0.0:
            keep_mask = jax.random.bernoulli(
                k_drop, 1.0 - self.dropout_rate, (B, self.hidden_size)
            ).astype(jnp.float32)
        else:
            keep_mask = jnp.ones((B, self.hidden_size), jnp.float32)

        output, weights_in_hidden, weights_hidden_out = bnn_forward_pallas(
            x.astype(jnp.float32),
            self.bn_input_gamma.reshape(1, -1),
            self.bn_input_beta.reshape(1, -1),
            self.weights_in_hidden_mu,
            self.weights_in_hidden_log_var,
            w1_eps,
            bias_hidden.reshape(1, -1),
            self.bn_hidden_gamma.reshape(1, -1),
            self.bn_hidden_beta.reshape(1, -1),
            self.weights_hidden_out_mu,
            self.weights_hidden_out_log_var,
            w2_eps,
            bias_out.reshape(1, -1),
            keep_mask,
            self.dropout_rate,
            use_bf16_matmul=False,  # keep exact f32 numerics at these tiny shapes
        )

        return (
            output,
            (
                weights_in_hidden,
                self.weights_in_hidden_log_var,
                weights_hidden_out,
                self.weights_hidden_out_log_var,
                bias_hidden,
                self.bias_hidden_log_var,
                bias_out,
                self.bias_out_log_var,
            ),
        )


if __name__ == "__main__":
    key = jax.random.PRNGKey(0)
    k_param, k_x, k_fwd = jax.random.split(key, 3)

    batch, input_size, hidden_size, output_size = 8, 16, 32, 8
    dropout_rate = 0.5

    model = BayesianNeuralNetworkWithBNPallas(
        input_size, hidden_size, output_size, dropout_rate, k_param
    )
    x = jax.random.normal(k_x, (batch, input_size), jnp.float32)

    output, params = model.forward(x, k_fwd)
    jax.block_until_ready(output)
    jax.block_until_ready(params)

    assert output.shape == (batch, output_size)
    assert params[0].shape == (input_size, hidden_size)
    assert params[2].shape == (hidden_size, output_size)
    assert bool(jnp.all(jnp.isfinite(output)))
    print("KERNEL_OK")
</pallas_src>

<mosaic_0001>
module attributes {stable_mosaic.version = 11 : i64} {
  func.func @kernel(%arg0: memref<8x16xf32, #tpu.memory_space<vmem>>, %arg1: memref<1x16xf32, #tpu.memory_space<vmem>>, %arg2: memref<1x16xf32, #tpu.memory_space<vmem>>, %arg3: memref<16x32xf32, #tpu.memory_space<vmem>>, %arg4: memref<16x32xf32, #tpu.memory_space<vmem>>, %arg5: memref<16x32xf32, #tpu.memory_space<vmem>>, %arg6: memref<1x32xf32, #tpu.memory_space<vmem>>, %arg7: memref<1x32xf32, #tpu.memory_space<vmem>>, %arg8: memref<1x32xf32, #tpu.memory_space<vmem>>, %arg9: memref<32x8xf32, #tpu.memory_space<vmem>>, %arg10: memref<32x8xf32, #tpu.memory_space<vmem>>, %arg11: memref<32x8xf32, #tpu.memory_space<vmem>>, %arg12: memref<1x8xf32, #tpu.memory_space<vmem>>, %arg13: memref<8x32xf32, #tpu.memory_space<vmem>>, %arg14: memref<8x8xf32, #tpu.memory_space<vmem>>, %arg15: memref<16x32xf32, #tpu.memory_space<vmem>>, %arg16: memref<32x8xf32, #tpu.memory_space<vmem>>) attributes {dimension_semantics = [], scalar_prefetch = 0 : i64, scratch_operands = 0 : i64, tpu.core_type = #tpu.core_type<tc>} {
    %c0 = arith.constant 0 : index
    %c0_0 = arith.constant 0 : index
    %0 = vector.load %arg0[%c0, %c0_0] : memref<8x16xf32, #tpu.memory_space<vmem>>, vector<8x16xf32>
    %cst = arith.constant dense<0.000000e+00> : vector<16xf32>
    %1 = vector.multi_reduction <add>, %0, %cst [0] : vector<8x16xf32> to vector<16xf32>
    %2 = vector.shape_cast %1 : vector<16xf32> to vector<1x16xf32>
    %cst_1 = arith.constant 1.250000e-01 : f32
    %3 = vector.broadcast %cst_1 : f32 to vector<1x16xf32>
    %4 = arith.mulf %2, %3 : vector<1x16xf32>
    %5 = arith.mulf %0, %0 : vector<8x16xf32>
    %cst_2 = arith.constant dense<0.000000e+00> : vector<16xf32>
    %6 = vector.multi_reduction <add>, %5, %cst_2 [0] : vector<8x16xf32> to vector<16xf32>
    %7 = vector.shape_cast %6 : vector<16xf32> to vector<1x16xf32>
    %cst_3 = arith.constant 1.250000e-01 : f32
    %8 = vector.broadcast %cst_3 : f32 to vector<1x16xf32>
    %9 = arith.mulf %7, %8 : vector<1x16xf32>
    %10 = arith.mulf %4, %4 : vector<1x16xf32>
    %11 = arith.subf %9, %10 : vector<1x16xf32>
    %c0_4 = arith.constant 0 : index
    %c0_5 = arith.constant 0 : index
    %12 = vector.load %arg1[%c0_4, %c0_5] : memref<1x16xf32, #tpu.memory_space<vmem>>, vector<1x16xf32>
    %cst_6 = arith.constant 9.99999974E-6 : f32
    %13 = vector.broadcast %cst_6 : f32 to vector<1x16xf32>
    %14 = arith.addf %11, %13 : vector<1x16xf32>
    %15 = math.rsqrt %14 : vector<1x16xf32>
    %16 = arith.mulf %12, %15 : vector<1x16xf32>
    %17 = vector.broadcast %16 : vector<1x16xf32> to vector<8x16xf32>
    %18 = arith.mulf %0, %17 : vector<8x16xf32>
    %c0_7 = arith.constant 0 : index
    %c0_8 = arith.constant 0 : index
    %19 = vector.load %arg2[%c0_7, %c0_8] : memref<1x16xf32, #tpu.memory_space<vmem>>, vector<1x16xf32>
    %20 = arith.mulf %4, %16 : vector<1x16xf32>
    %21 = arith.subf %19, %20 : vector<1x16xf32>
    %22 = vector.broadcast %21 : vector<1x16xf32> to vector<8x16xf32>
    %23 = arith.addf %18, %22 : vector<8x16xf32>
    %c0_9 = arith.constant 0 : index
    %c0_10 = arith.constant 0 : index
    %24 = vector.load %arg3[%c0_9, %c0_10] : memref<16x32xf32, #tpu.memory_space<vmem>>, vector<16x32xf32>
    %c0_11 = arith.constant 0 : index
    %c0_12 = arith.constant 0 : index
    %25 = vector.load %arg4[%c0_11, %c0_12] : memref<16x32xf32, #tpu.memory_space<vmem>>, vector<16x32xf32>
    %cst_13 = arith.constant 5.000000e-01 : f32
    %26 = vector.broadcast %cst_13 : f32 to vector<16x32xf32>
    %27 = arith.mulf %26, %25 : vector<16x32xf32>
    %28 = math.exp %27 : vector<16x32xf32>
    %c0_14 = arith.constant 0 : index
    %c0_15 = arith.constant 0 : index
    %29 = vector.load %arg5[%c0_14, %c0_15] : memref<16x32xf32, #tpu.memory_space<vmem>>, vector<16x32xf32>
    %30 = arith.mulf %28, %29 : vector<16x32xf32>
    %31 = arith.addf %24, %30 : vector<16x32xf32>
    %c0_16 = arith.constant 0 : index
    %c0_17 = arith.constant 0 : index
    %32 = vector.load %arg15[%c0_16, %c0_17] : memref<16x32xf32, #tpu.memory_space<vmem>>, vector<16x32xf32>
    tpu.vector_store %arg15[%c0_16, %c0_17], %31 {strides = array<i32>} : memref<16x32xf32, #tpu.memory_space<vmem>>, vector<16x32xf32>,
    %cst_18 = arith.constant dense<0.000000e+00> : vector<8x32xf32>
    %33 = tpu.matmul %23, %31, %cst_18 {dimension_numbers = #tpu.dot_dimension_numbers<[1], [0], [0], [1], [0, 0, 1, 1], [], []>} : vector<8x16xf32>, vector<16x32xf32>, vector<8x32xf32> -> vector<8x32xf32>
    %c0_19 = arith.constant 0 : index
    %c0_20 = arith.constant 0 : index
    %34 = vector.load %arg6[%c0_19, %c0_20] : memref<1x32xf32, #tpu.memory_space<vmem>>, vector<1x32xf32>
    %35 = vector.broadcast %34 : vector<1x32xf32> to vector<8x32xf32>
    %36 = arith.addf %33, %35 : vector<8x32xf32>
    %37 = math.tanh %36 : vector<8x32xf32>
    %cst_21 = arith.constant dense<0.000000e+00> : vector<32xf32>
    %38 = vector.multi_reduction <add>, %37, %cst_21 [0] : vector<8x32xf32> to vector<32xf32>
    %39 = vector.shape_cast %38 : vector<32xf32> to vector<1x32xf32>
    %cst_22 = arith.constant 1.250000e-01 : f32
    %40 = vector.broadcast %cst_22 : f32 to vector<1x32xf32>
    %41 = arith.mulf %39, %40 : vector<1x32xf32>
    %42 = arith.mulf %37, %37 : vector<8x32xf32>
    %cst_23 = arith.constant dense<0.000000e+00> : vector<32xf32>
    %43 = vector.multi_reduction <add>, %42, %cst_23 [0] : vector<8x32xf32> to vector<32xf32>
    %44 = vector.shape_cast %43 : vector<32xf32> to vector<1x32xf32>
    %cst_24 = arith.constant 1.250000e-01 : f32
    %45 = vector.broadcast %cst_24 : f32 to vector<1x32xf32>
    %46 = arith.mulf %44, %45 : vector<1x32xf32>
    %47 = arith.mulf %41, %41 : vector<1x32xf32>
    %48 = arith.subf %46, %47 : vector<1x32xf32>
    %c0_25 = arith.constant 0 : index
    %c0_26 = arith.constant 0 : index
    %49 = vector.load %arg7[%c0_25, %c0_26] : memref<1x32xf32, #tpu.memory_space<vmem>>, vector<1x32xf32>
    %cst_27 = arith.constant 9.99999974E-6 : f32
    %50 = vector.broadcast %cst_27 : f32 to vector<1x32xf32>
    %51 = arith.addf %48, %50 : vector<1x32xf32>
    %52 = math.rsqrt %51 : vector<1x32xf32>
    %53 = arith.mulf %49, %52 : vector<1x32xf32>
    %cst_28 = arith.constant 2.000000e+00 : f32
    %54 = vector.broadcast %cst_28 : f32 to vector<1x32xf32>
    %55 = arith.mulf %53, %54 : vector<1x32xf32>
    %c0_29 = arith.constant 0 : index
    %c0_30 = arith.constant 0 : index
    %56 = vector.load %arg8[%c0_29, %c0_30] : memref<1x32xf32, #tpu.memory_space<vmem>>, vector<1x32xf32>
    %57 = arith.mulf %41, %53 : vector<1x32xf32>
    %58 = arith.subf %56, %57 : vector<1x32xf32>
    %cst_31 = arith.constant 2.000000e+00 : f32
    %59 = vector.broadcast %cst_31 : f32 to vector<1x32xf32>
    %60 = arith.mulf %58, %59 : vector<1x32xf32>
    %61 = vector.broadcast %55 : vector<1x32xf32> to vector<8x32xf32>
    %62 = arith.mulf %37, %61 : vector<8x32xf32>
    %63 = vector.broadcast %60 : vector<1x32xf32> to vector<8x32xf32>
    %64 = arith.addf %62, %63 : vector<8x32xf32>
    %c0_32 = arith.constant 0 : index
    %c0_33 = arith.constant 0 : index
    %65 = vector.load %arg13[%c0_32, %c0_33] : memref<8x32xf32, #tpu.memory_space<vmem>>, vector<8x32xf32>
    %66 = arith.mulf %64, %65 : vector<8x32xf32>
    %c0_34 = arith.constant 0 : index
    %c0_35 = arith.constant 0 : index
    %67 = vector.load %arg9[%c0_34, %c0_35] : memref<32x8xf32, #tpu.memory_space<vmem>>, vector<32x8xf32>
    %c0_36 = arith.constant 0 : index
    %c0_37 = arith.constant 0 : index
    %68 = vector.load %arg10[%c0_36, %c0_37] : memref<32x8xf32, #tpu.memory_space<vmem>>, vector<32x8xf32>
    %cst_38 = arith.constant 5.000000e-01 : f32
    %69 = vector.broadcast %cst_38 : f32 to vector<32x8xf32>
    %70 = arith.mulf %69, %68 : vector<32x8xf32>
    %71 = math.exp %70 : vector<32x8xf32>
    %c0_39 = arith.constant 0 : index
    %c0_40 = arith.constant 0 : index
    %72 = vector.load %arg11[%c0_39, %c0_40] : memref<32x8xf32, #tpu.memory_space<vmem>>, vector<32x8xf32>
    %73 = arith.mulf %71, %72 : vector<32x8xf32>
    %74 = arith.addf %67, %73 : vector<32x8xf32>
    %c0_41 = arith.constant 0 : index
    %c0_42 = arith.constant 0 : index
    %75 = vector.load %arg16[%c0_41, %c0_42] : memref<32x8xf32, #tpu.memory_space<vmem>>, vector<32x8xf32>
    tpu.vector_store %arg16[%c0_41, %c0_42], %74 {strides = array<i32>} : memref<32x8xf32, #tpu.memory_space<vmem>>, vector<32x8xf32>,
    %cst_43 = arith.constant dense<0.000000e+00> : vector<8x8xf32>
    %76 = tpu.matmul %66, %74, %cst_43 {dimension_numbers = #tpu.dot_dimension_numbers<[1], [0], [0], [1], [0, 0, 1, 1], [], []>} : vector<8x32xf32>, vector<32x8xf32>, vector<8x8xf32> -> vector<8x8xf32>
    %c0_44 = arith.constant 0 : index
    %c0_45 = arith.constant 0 : index
    %77 = vector.load %arg12[%c0_44, %c0_45] : memref<1x8xf32, #tpu.memory_space<vmem>>, vector<1x8xf32>
    %78 = vector.broadcast %77 : vector<1x8xf32> to vector<8x8xf32>
    %79 = arith.addf %76, %78 : vector<8x8xf32>
    %c0_46 = arith.constant 0 : index
    %c0_47 = arith.constant 0 : index
    %80 = vector.load %arg14[%c0_46, %c0_47] : memref<8x8xf32, #tpu.memory_space<vmem>>, vector<8x8xf32>
    tpu.vector_store %arg14[%c0_46, %c0_47], %79 {strides = array<i32>} : memref<8x8xf32, #tpu.memory_space<vmem>>, vector<8x8xf32>,
    return
  }
}

</mosaic_0001>

<llo_original>
// kernel: tpu_custom_call.1
$region0: #{tpu_custom_call.1}
  #allocation0 [shape = 'u32[]', space=smem, size = 0x4, offset = 0x4, fixed_abs, tag = 'smem constant byte address 0x4 - core index']
  #allocation1 [shape = 'u32[144,128]{1,0:T(1,128)}', space=vmem, size = 0x12000, scoped, tag = 'internal scratch']
  %s0 = inlined_call_operand.vmem [shape: f32[8,16], index: 0, kind: input, shape index: {}]
  %s1 = inlined_call_operand.vmem [shape: f32[1,16], index: 1, kind: input, shape index: {}]
  %s2 = inlined_call_operand.vmem [shape: f32[1,16], index: 2, kind: input, shape index: {}]
  %s3 = inlined_call_operand.vmem [shape: f32[16,32], index: 3, kind: input, shape index: {}]
  %s4 = inlined_call_operand.vmem [shape: f32[16,32], index: 4, kind: input, shape index: {}]
  %s5 = inlined_call_operand.vmem [shape: f32[16,32], index: 5, kind: input, shape index: {}]
  %s6 = inlined_call_operand.vmem [shape: f32[1,32], index: 6, kind: input, shape index: {}]
  %s7 = inlined_call_operand.vmem [shape: f32[1,32], index: 7, kind: input, shape index: {}]
  %s8 = inlined_call_operand.vmem [shape: f32[1,32], index: 8, kind: input, shape index: {}]
  %s9 = inlined_call_operand.vmem [shape: f32[32,8], index: 9, kind: input, shape index: {}]
  %s10 = inlined_call_operand.vmem [shape: f32[32,8], index: 10, kind: input, shape index: {}]
  %s11 = inlined_call_operand.vmem [shape: f32[32,8], index: 11, kind: input, shape index: {}]
  %s12 = inlined_call_operand.vmem [shape: f32[1,8], index: 12, kind: input, shape index: {}]
  %s13 = inlined_call_operand.vmem [shape: f32[8,32], index: 13, kind: input, shape index: {}]
  %s14 = inlined_call_operand.hbm [shape: f32[8,8], index: 14, kind: output, shape index: {0}]
  %s15 = inlined_call_operand.hbm [shape: f32[16,32], index: 15, kind: output, shape index: {1}]
  %s16 = inlined_call_operand.vmem [shape: f32[32,8], index: 16, kind: output, shape index: {2}]
  %17 = xla_tuple %s14, %s15, %s16
  %s18 = sld [smem:[#allocation0]]
  $region82: #{tpu_custom_call.1} parent=0
    _
  %s20 = ssub.s32 1, %s18
  %s21 = scalar_select 0, %s20, %s18
  $region1: #{tpu_custom_call.1} parent=0
    #allocation2 [shape = 'u8[4096]{0}', space=vmem, size = 0x1000, scoped, tag = 'output window, operand 0, single buffered']
    #allocation3 [shape = 's32[1]{0}', space=sflag, size = 0x4, scoped, tag = 'scoped memory for tpu_custom_call.1']
    #allocation4 [shape = 'u8[8192]{0}', space=vmem, size = 0x2000, scoped, tag = 'output window, operand 1, single buffered']
    #allocation5 [shape = 's32[1]{0}', space=sflag, size = 0x4, scoped, tag = 'scoped memory for tpu_custom_call.1']
    %22 = vsyncpa [#allocation3], 0
    %23 = vsyncpa [#allocation5], 0
    // Predicated region
    $region2: #{tpu_custom_call.1} parent=1 // pred_check
      _
    $region3: #{tpu_custom_call.1} parent=1 // pred_check_branch
      %25 = sbr.rel (0) target = $region5
    $region4: #{tpu_custom_call.1} parent=1 // pred_region
      _
    $region5: #{tpu_custom_call.1} parent=1 // pred_fallthru
      _
    // Predicated region
    $region6: #{tpu_custom_call.1} parent=1 // pred_check
      _
    $region7: #{tpu_custom_call.1} parent=1 // pred_check_branch
      %27 = sbr.rel (0) target = $region9
    $region8: #{tpu_custom_call.1} parent=1 // pred_region
      _
    $region9: #{tpu_custom_call.1} parent=1 // pred_fallthru
      _
    // Predicated region
    $region10: #{tpu_custom_call.1} parent=1 // pred_check
      _
    $region11: #{tpu_custom_call.1} parent=1 // pred_check_branch
      %29 = sbr.rel (0) target = $region13
    $region12: #{tpu_custom_call.1} parent=1 // pred_region
      _
    $region13: #{tpu_custom_call.1} parent=1 // pred_fallthru
      _
    // Predicated region
    $region14: #{tpu_custom_call.1} parent=1 // pred_check
      _
    $region15: #{tpu_custom_call.1} parent=1 // pred_check_branch
      %31 = sbr.rel (0) target = $region17
    $region16: #{tpu_custom_call.1} parent=1 // pred_region
      _
    $region17: #{tpu_custom_call.1} parent=1 // pred_fallthru
      _
    // Predicated region
    $region18: #{tpu_custom_call.1} parent=1 // pred_check
      _
    $region19: #{tpu_custom_call.1} parent=1 // pred_check_branch
      %33 = sbr.rel (0) target = $region21
    $region20: #{tpu_custom_call.1} parent=1 // pred_region
      _
    $region21: #{tpu_custom_call.1} parent=1 // pred_fallthru
      _
    // Predicated region
    $region22: #{tpu_custom_call.1} parent=1 // pred_check
      _
    $region23: #{tpu_custom_call.1} parent=1 // pred_check_branch
      %35 = sbr.rel (0) target = $region25
    $region24: #{tpu_custom_call.1} parent=1 // pred_region
      _
    $region25: #{tpu_custom_call.1} parent=1 // pred_fallthru
      _
    // Predicated region
    $region26: #{tpu_custom_call.1} parent=1 // pred_check
      _
    $region27: #{tpu_custom_call.1} parent=1 // pred_check_branch
      %37 = sbr.rel (0) target = $region29
    $region28: #{tpu_custom_call.1} parent=1 // pred_region
      _
    $region29: #{tpu_custom_call.1} parent=1 // pred_fallthru
      _
    // Predicated region
    $region30: #{tpu_custom_call.1} parent=1 // pred_check
      _
    $region31: #{tpu_custom_call.1} parent=1 // pred_check_branch
      %39 = sbr.rel (0) target = $region33
    $region32: #{tpu_custom_call.1} parent=1 // pred_region
      _
    $region33: #{tpu_custom_call.1} parent=1 // pred_fallthru
      _
    // Predicated region
    $region34: #{tpu_custom_call.1} parent=1 // pred_check
      _
    $region35: #{tpu_custom_call.1} parent=1 // pred_check_branch
      %41 = sbr.rel (0) target = $region37
    $region36: #{tpu_custom_call.1} parent=1 // pred_region
      _
    $region37: #{tpu_custom_call.1} parent=1 // pred_fallthru
      _
    // Predicated region
    $region38: #{tpu_custom_call.1} parent=1 // pred_check
      _
    $region39: #{tpu_custom_call.1} parent=1 // pred_check_branch
      %43 = sbr.rel (0) target = $region41
    $region40: #{tpu_custom_call.1} parent=1 // pred_region
      _
    $region41: #{tpu_custom_call.1} parent=1 // pred_fallthru
      _
    // Predicated region
    $region42: #{tpu_custom_call.1} parent=1 // pred_check
      _
    $region43: #{tpu_custom_call.1} parent=1 // pred_check_branch
      %45 = sbr.rel (0) target = $region45
    $region44: #{tpu_custom_call.1} parent=1 // pred_region
      _
    $region45: #{tpu_custom_call.1} parent=1 // pred_fallthru
      _
    // Predicated region
    $region46: #{tpu_custom_call.1} parent=1 // pred_check
      _
    $region47: #{tpu_custom_call.1} parent=1 // pred_check_branch
      %47 = sbr.rel (0) target = $region49
    $region48: #{tpu_custom_call.1} parent=1 // pred_region
      _
    $region49: #{tpu_custom_call.1} parent=1 // pred_fallthru
      _
    // Predicated region
    $region50: #{tpu_custom_call.1} parent=1 // pred_check
      _
    $region51: #{tpu_custom_call.1} parent=1 // pred_check_branch
      %49 = sbr.rel (0) target = $region53
    $region52: #{tpu_custom_call.1} parent=1 // pred_region
      _
    $region53: #{tpu_custom_call.1} parent=1 // pred_fallthru
      _
    // Predicated region
    $region54: #{tpu_custom_call.1} parent=1 // pred_check
      _
    $region55: #{tpu_custom_call.1} parent=1 // pred_check_branch
      %51 = sbr.rel (0) target = $region57
    $region56: #{tpu_custom_call.1} parent=1 // pred_region
      _
    $region57: #{tpu_custom_call.1} parent=1 // pred_fallthru
      _
    %v52 = vld [vmem:[%s0] sm:$0xff]
    %vm53 = vcmask 130048
    %v54 = vsel %vm53, %v52, 0.0
    %v55 = vrot.slane %v54, 4
    %v56 = vadd.f32 %v54, %v55
    %v57 = vrot.slane %v56, 2
    %v58 = vadd.f32 %v56, %v57
    %v59 = vrot.slane %v58, 1
    %v60 = vadd.f32 %v58, %v59
    %v61 = vmul.f32 %v60, 0.125
    %v62 = vmul.f32 %v52, %v52
    %v63 = vsel %vm53, %v62, 0.0
    %v64 = vrot.slane %v63, 4
    %v65 = vadd.f32 %v63, %v64
    %v66 = vrot.slane %v65, 2
    %v67 = vadd.f32 %v65, %v66
    %v68 = vrot.slane %v67, 1
    %v69 = vadd.f32 %v67, %v68
    %v70 = vmul.f32 %v69, 0.125
    %v71 = vmul.f32 %v61, %v61
    %v72 = vsub.f32 %v70, %v71
    %v73 = vld [vmem:[%s1] sm:$0x1]
    %v74 = vadd.f32 %v72, 1e-05
    %v75 = vrsqrt.pop %v74
    %v76 = vmul.f32 %v73, %v75
    %v78 = vlaneseq
    %v79 = vshrl.u32 %v78, 7
    %v80 = vsub.s32 0, %v79
    %v81 = vrot.slane %v76, %v80
    %v83 = vmul.f32 %v52, %v81
    %v84 = vld [vmem:[%s2] sm:$0x1]
    %v85 = vmul.f32 %v61, %v76
    %v86 = vsub.f32 %v84, %v85
    %v88 = vlaneseq
    %v89 = vshrl.u32 %v88, 7
    %v90 = vsub.s32 0, %v89
    %v91 = vrot.slane %v86, %v90
    %v93 = vadd.f32 %v83, %v91
    %v94 = vld [vmem:[%s3] sm:$0xff]
    %v95 = vld [vmem:[%s3 + $0x8] sm:$0xff]
    %v96 = vld [vmem:[%s4] sm:$0xff]
    %v97 = vld [vmem:[%s4 + $0x8] sm:$0xff]
    %v98 = vmul.f32 %v96, 0.5
    %v99 = vmul.f32 %v97, 0.5
    %v100 = vmul.f32 %v98, 1.442695
    %v101 = vpow.pop %v100
    %v102 = vmul.f32 %v99, 1.442695
    %v103 = vpow.pop %v102
    %v104 = vld [vmem:[%s5] sm:$0xff]
    %v105 = vld [vmem:[%s5 + $0x8] sm:$0xff]
    %v106 = vmul.f32 %v101, %v104
    %v107 = vmul.f32 %v103, %v105
    %v108 = vadd.f32 %v94, %v106
    %v109 = vadd.f32 %v95, %v107
    %vm110 = vcmask 261120
    %111 = vst.msk [vmem:[#allocation4] sm:$0xff] %vm110, %v108
    %112 = vst.msk [vmem:[#allocation4 + $0x8] sm:$0xff] %vm110, %v109
    %v113 = vld [vmem:[%s6] sm:$0x1]
    %v115 = vlaneseq
    %v116 = vshrl.u32 %v115, 7
    %v117 = vsub.s32 0, %v116
    %v118 = vrot.slane %v113, %v117
    %v121 = vsel %vm53, %v93, 0
    %123 = vmatprep.subr.mxu0 0.0
    %124 = vmatpush1.msra.mxu0 0.0
    %125 = vmatprep.subr.mxu0 0.0
    %126 = vmatpush1.msra.mxu0 0.0
    %127 = vmatprep.subr.mxu0 0.0
    %128 = vmatpush1.msra.mxu0 0.0
    %129 = vmatprep.subr.mxu0 0.0
    %130 = vmatpush1.msra.mxu0 0.0
    %131 = vmatprep.subr.mxu0 0.0
    %132 = vmatpush1.msra.mxu0 0.0
    %133 = vmatprep.subr.mxu0 0.0
    %134 = vmatpush1.msra.mxu0 0.0
    %135 = vmatprep.subr.mxu0 0.0
    %136 = vmatpush1.msra.mxu0 0.0
    %137 = vmatprep.subr.mxu0 0.0
    %138 = vmatpush1.msra.mxu0 0.0
    %139 = vmatprep.subr.mxu0 0.0
    %140 = vmatpush1.msra.mxu0 0.0
    %141 = vmatprep.subr.mxu0 0.0
    %142 = vmatpush1.msra.mxu0 0.0
    %143 = vmatprep.subr.mxu0 0.0
    %144 = vmatpush1.msra.mxu0 0.0
    %145 = vmatprep.subr.mxu0 0.0
    %146 = vmatpush1.msra.mxu0 0.0
    %147 = vmatprep.subr.mxu0 0.0
    %148 = vmatpush1.msra.mxu0 0.0
    %149 = vmatprep.subr.mxu0 0.0
    %150 = vmatpush1.msra.mxu0 0.0
    %151 = vmatprep.subr.mxu0 0.0
    %152 = vmatpush1.msra.mxu0 %v109
    %153 = vmatprep.subr.mxu0 0.0
    %154 = vmatpush1.msra.mxu0 %v108
    %155 = vmatprep.subr.mxu0 0.0
    %156 = vmatpush2.msra.mxu0 0.0
    %157 = vmatprep.subr.mxu0 0.0
    %158 = vmatpush2.msra.mxu0 0.0
    %159 = vmatprep.subr.mxu0 0.0
    %160 = vmatpush2.msra.mxu0 0.0
    %161 = vmatprep.subr.mxu0 0.0
    %162 = vmatpush2.msra.mxu0 0.0
    %163 = vmatprep.subr.mxu0 0.0
    %164 = vmatpush2.msra.mxu0 0.0
    %165 = vmatprep.subr.mxu0 0.0
    %166 = vmatpush2.msra.mxu0 0.0
    %167 = vmatprep.subr.mxu0 0.0
    %168 = vmatpush2.msra.mxu0 0.0
    %169 = vmatprep.subr.mxu0 0.0
    %170 = vmatpush2.msra.mxu0 0.0
    %171 = vmatprep.subr.mxu0 0.0
    %172 = vmatpush2.msra.mxu0 0.0
    %173 = vmatprep.subr.mxu0 0.0
    %174 = vmatpush2.msra.mxu0 0.0
    %175 = vmatprep.subr.mxu0 0.0
    %176 = vmatpush2.msra.mxu0 0.0
    %177 = vmatprep.subr.mxu0 0.0
    %178 = vmatpush2.msra.mxu0 0.0
    %179 = vmatprep.subr.mxu0 0.0
    %180 = vmatpush2.msra.mxu0 0.0
    %181 = vmatprep.subr.mxu0 0.0
    %182 = vmatpush2.msra.mxu0 0.0
    %183 = vmatprep.subr.mxu0 0.0
    %184 = vmatpush2.msra.mxu0 0.0
    %185 = vmatprep.subr.mxu0 0.0
    %186 = vmatpush2.msra.mxu0 0.0
    %187 = vmatprep.mubr.f32.mxu0 0.0
    %188 = vmatmul.mubr.f32.gmra.mxu0 %v121
    %v189 = vpop.f32.mrf.mxu0
    %v190 = vadd.f32 %v118, %v189
    %v191 = vpop.f32.mrf.mxu0
    %192 = vdwg.mxu0
    %v193 = vtanh.pop %v190
    %v194 = vsel %vm110, %v193, 0.0
    %v195 = vrot.slane %v194, 4
    %v196 = vadd.f32 %v194, %v195
    %v197 = vrot.slane %v196, 2
    %v198 = vadd.f32 %v196, %v197
    %v199 = vrot.slane %v198, 1
    %v200 = vadd.f32 %v198, %v199
    %v201 = vmul.f32 %v200, 0.125
    %v202 = vmul.f32 %v193, %v193
    %v203 = vsel %vm110, %v202, 0.0
    %v204 = vrot.slane %v203, 4
    %v205 = vadd.f32 %v203, %v204
    %v206 = vrot.slane %v205, 2
    %v207 = vadd.f32 %v205, %v206
    %v208 = vrot.slane %v207, 1
    %v209 = vadd.f32 %v207, %v208
    %v210 = vmul.f32 %v209, 0.125
    %v211 = vmul.f32 %v201, %v201
    %v212 = vsub.f32 %v210, %v211
    %v213 = vld [vmem:[%s7] sm:$0x1]
    %v214 = vadd.f32 %v212, 1e-05
    %v215 = vrsqrt.pop %v214
    %v216 = vmul.f32 %v213, %v215
    %v217 = vmul.f32 %v216, 2.0
    %v218 = vld [vmem:[%s8] sm:$0x1]
    %v219 = vmul.f32 %v201, %v216
    %v220 = vsub.f32 %v218, %v219
    %v221 = vmul.f32 %v220, 2.0
    %v223 = vlaneseq
    %v224 = vshrl.u32 %v223, 7
    %v225 = vsub.s32 0, %v224
    %v226 = vrot.slane %v217, %v225
    %v228 = vmul.f32 %v193, %v226
    %v230 = vlaneseq
    %v231 = vshrl.u32 %v230, 7
    %v232 = vsub.s32 0, %v231
    %v233 = vrot.slane %v221, %v232
    %v235 = vadd.f32 %v228, %v233
    %v236 = vld [vmem:[%s13] sm:$0xff]
    %v237 = vmul.f32 %v235, %v236
    %v238 = vld [vmem:[%s9] sm:$0xff]
    %v239 = vld [vmem:[%s9 + $0x8] sm:$0xff]
    %v240 = vld [vmem:[%s9 + $0x10] sm:$0xff]
    %v241 = vld [vmem:[%s9 + $0x18] sm:$0xff]
    %v242 = vld [vmem:[%s10] sm:$0xff]
    %v243 = vld [vmem:[%s10 + $0x8] sm:$0xff]
    %v244 = vld [vmem:[%s10 + $0x10] sm:$0xff]
    %v245 = vld [vmem:[%s10 + $0x18] sm:$0xff]
    %v246 = vmul.f32 %v242, 0.5
    %v247 = vmul.f32 %v243, 0.5
    %v248 = vmul.f32 %v244, 0.5
    %v249 = vmul.f32 %v245, 0.5
    %v250 = vmul.f32 %v246, 1.442695
    %v251 = vpow.pop %v250
    %v252 = vmul.f32 %v247, 1.442695
    %v253 = vpow.pop %v252
    %v254 = vmul.f32 %v248, 1.442695
    %v255 = vpow.pop %v254
    %v256 = vmul.f32 %v249, 1.442695
    %v257 = vpow.pop %v256
    %v258 = vld [vmem:[%s11] sm:$0xff]
    %v259 = vld [vmem:[%s11 + $0x8] sm:$0xff]
    %v260 = vld [vmem:[%s11 + $0x10] sm:$0xff]
    %v261 = vld [vmem:[%s11 + $0x18] sm:$0xff]
    %v262 = vmul.f32 %v251, %v258
    %v263 = vmul.f32 %v253, %v259
    %v264 = vmul.f32 %v255, %v260
    %v265 = vmul.f32 %v257, %v261
    %v266 = vadd.f32 %v238, %v262
    %v267 = vadd.f32 %v239, %v263
    %v268 = vadd.f32 %v240, %v264
    %v269 = vadd.f32 %v241, %v265
    %vm270 = vcmask 64512
    %271 = vst.msk [vmem:[%s16] sm:$0xff] %vm270, %v266
    %272 = vst.msk [vmem:[%s16 + $0x8] sm:$0xff] %vm270, %v267
    %273 = vst.msk [vmem:[%s16 + $0x10] sm:$0xff] %vm270, %v268
    %274 = vst.msk [vmem:[%s16 + $0x18] sm:$0xff] %vm270, %v269
    %v275 = vld [vmem:[%s12] sm:$0x1]
    %v277 = vlaneseq
    %v278 = vshrl.u32 %v277, 7
    %v279 = vsub.s32 0, %v278
    %v280 = vrot.slane %v275, %v279
    %v283 = vsel %vm110, %v237, 0
    %285 = vmatprep.subr.mxu0 0.0
    %286 = vmatpush1.msra.mxu0 0.0
    %287 = vmatprep.subr.mxu0 0.0
    %288 = vmatpush1.msra.mxu0 0.0
    %289 = vmatprep.subr.mxu0 0.0
    %290 = vmatpush1.msra.mxu0 0.0
    %291 = vmatprep.subr.mxu0 0.0
    %292 = vmatpush1.msra.mxu0 0.0
    %293 = vmatprep.subr.mxu0 0.0
    %294 = vmatpush1.msra.mxu0 0.0
    %295 = vmatprep.subr.mxu0 0.0
    %296 = vmatpush1.msra.mxu0 0.0
    %297 = vmatprep.subr.mxu0 0.0
    %298 = vmatpush1.msra.mxu0 0.0
    %299 = vmatprep.subr.mxu0 0.0
    %300 = vmatpush1.msra.mxu0 0.0
    %301 = vmatprep.subr.mxu0 0.0
    %302 = vmatpush1.msra.mxu0 0.0
    %303 = vmatprep.subr.mxu0 0.0
    %304 = vmatpush1.msra.mxu0 0.0
    %305 = vmatprep.subr.mxu0 0.0
    %306 = vmatpush1.msra.mxu0 0.0
    %307 = vmatprep.subr.mxu0 0.0
    %308 = vmatpush1.msra.mxu0 0.0
    %309 = vmatprep.subr.mxu0 0.0
    %310 = vmatpush1.msra.mxu0 %v269
    %311 = vmatprep.subr.mxu0 0.0
    %312 = vmatpush1.msra.mxu0 %v268
    %313 = vmatprep.subr.mxu0 0.0
    %314 = vmatpush1.msra.mxu0 %v267
    %315 = vmatprep.subr.mxu0 0.0
    %316 = vmatpush1.msra.mxu0 %v266
    %317 = vmatprep.subr.mxu0 0.0
    %318 = vmatpush2.msra.mxu0 0.0
    %319 = vmatprep.subr.mxu0 0.0
    %320 = vmatpush2.msra.mxu0 0.0
    %321 = vmatprep.subr.mxu0 0.0
    %322 = vmatpush2.msra.mxu0 0.0
    %323 = vmatprep.subr.mxu0 0.0
    %324 = vmatpush2.msra.mxu0 0.0
    %325 = vmatprep.subr.mxu0 0.0
    %326 = vmatpush2.msra.mxu0 0.0
    %327 = vmatprep.subr.mxu0 0.0
    %328 = vmatpush2.msra.mxu0 0.0
    %329 = vmatprep.subr.mxu0 0.0
    %330 = vmatpush2.msra.mxu0 0.0
    %331 = vmatprep.subr.mxu0 0.0
    %332 = vmatpush2.msra.mxu0 0.0
    %333 = vmatprep.subr.mxu0 0.0
    %334 = vmatpush2.msra.mxu0 0.0
    %335 = vmatprep.subr.mxu0 0.0
    %336 = vmatpush2.msra.mxu0 0.0
    %337 = vmatprep.subr.mxu0 0.0
    %338 = vmatpush2.msra.mxu0 0.0
    %339 = vmatprep.subr.mxu0 0.0
    %340 = vmatpush2.msra.mxu0 0.0
    %341 = vmatprep.subr.mxu0 0.0
    %342 = vmatpush2.msra.mxu0 0.0
    %343 = vmatprep.subr.mxu0 0.0
    %344 = vmatpush2.msra.mxu0 0.0
    %345 = vmatprep.subr.mxu0 0.0
    %346 = vmatpush2.msra.mxu0 0.0
    %347 = vmatprep.subr.mxu0 0.0
    %348 = vmatpush2.msra.mxu0 0.0
    %349 = vmatprep.mubr.f32.mxu0 0.0
    %350 = vmatmul.mubr.f32.gmra.mxu0 %v283
    %v351 = vpop.f32.mrf.mxu0
    %v352 = vadd.f32 %v280, %v351
    %v353 = vpop.f32.mrf.mxu0
    %354 = vdwg.mxu0
    %355 = vst.msk [vmem:[#allocation2] sm:$0xff] %vm270, %v352
    // Predicated region
    $region58: #{tpu_custom_call.1} parent=1 // pred_check
      _
    $region59: #{tpu_custom_call.1} parent=1 // pred_check_branch
      %357 = sbr.rel (0) target = $region61
    $region60: #{tpu_custom_call.1} parent=1 // pred_region
      %s359 = ssub.s32 128, 128
      %360 = vsyncadd [#allocation3], %s359
      %s362 = sshll.u32 [#allocation2], 4
      %s363 = int_to_ptr.vmem [resolvable:$true] %s362
      %365 = dma.vmem_to_hbm [thread:$0]  %s363, 128, %s14, [#allocation3]
    $region61: #{tpu_custom_call.1} parent=1 // pred_fallthru
      _
    // Predicated region
    $region62: #{tpu_custom_call.1} parent=1 // pred_check
      _
    $region63: #{tpu_custom_call.1} parent=1 // pred_check_branch
      %367 = sbr.rel (0) target = $region65
    $region64: #{tpu_custom_call.1} parent=1 // pred_region
      %s369 = ssub.s32 256, 256
      %370 = vsyncadd [#allocation5], %s369
      %s371 = sshll.u32 [#allocation4], 4
      %s372 = int_to_ptr.vmem [resolvable:$true] %s371
      %377 = dma.vmem_to_hbm [thread:$0]  %s372, 256, %s15, [#allocation5], 128, 128, 8
    $region65: #{tpu_custom_call.1} parent=1 // pred_fallthru
      _
    // Predicated region
    $region66: #{tpu_custom_call.1} parent=1 // pred_check
      _
    $region67: #{tpu_custom_call.1} parent=1 // pred_check_branch
      %379 = sbr.rel (0) target = $region69
    $region68: #{tpu_custom_call.1} parent=1 // pred_region
      _
    $region69: #{tpu_custom_call.1} parent=1 // pred_fallthru
      _
    // Predicated region
    $region70: #{tpu_custom_call.1} parent=1 // pred_check
      _
    $region71: #{tpu_custom_call.1} parent=1 // pred_check_branch
      %381 = sbr.rel (0) target = $region73
    $region72: #{tpu_custom_call.1} parent=1 // pred_region
      %382 = dma.done [#allocation3], 128
    $region73: #{tpu_custom_call.1} parent=1 // pred_fallthru
      _
    // Predicated region
    $region74: #{tpu_custom_call.1} parent=1 // pred_check
      _
    $region75: #{tpu_custom_call.1} parent=1 // pred_check_branch
      %384 = sbr.rel (0) target = $region77
    $region76: #{tpu_custom_call.1} parent=1 // pred_region
      %385 = dma.done [#allocation5], 256
    $region77: #{tpu_custom_call.1} parent=1 // pred_fallthru
      _
    // Predicated region
    $region78: #{tpu_custom_call.1} parent=1 // pred_check
      _
    $region79: #{tpu_custom_call.1} parent=1 // pred_check_branch
      %387 = sbr.rel (0) target = $region81
    $region80: #{tpu_custom_call.1} parent=1 // pred_region
      _
    $region81: #{tpu_custom_call.1} parent=1 // pred_fallthru
      _
    %388 = vsyncpa [#allocation3], 1
    %389 = vsyncpa [#allocation5], 1

</llo_original>
